<compile_context>
chip_gen: v7x
topology: tpu7x:2x2x1
jax: 0.10.0
libtpu: 0.0.40
codegen_flags: <defaults>
</compile_context>

<pallas_src>
import jax
import jax.numpy as jnp
from jax.experimental import pallas as pl
from jax.experimental.pallas import tpu as pltpu

# ----------------------------- configuration -----------------------------
B = 2                 # batch
NUM_DIE = 2
H = W = 16            # grid size
HW = H * W
LEN_EPISODE = 8
LAST_CHANNEL = 64     # shared_encoder.last_channel
REDUCED_DIM = 32      # reduced_dim_critic (>0 -> Linear projector)
# stacked_mask channels: num_die canvases + wiremask + position_mask
#                        + wiremask_next + position_mask_next + alignment_mask
C_STACK = NUM_DIE + 2 + 2 + 1
FINAL_IN = REDUCED_DIM + 2 * NUM_DIE      # visual feat + (die_emb, num_blk) = 36
HID = FINAL_IN // 2                       # fusion_hid_dim = 18

# -------- packed weight slab layout (row offsets into a [SLAB_ROWS,128] f32) --
ENC_W_R0 = 0                              # [C_STACK, LAST_CHANNEL]
ENC_B_R0 = ENC_W_R0 + C_STACK             # [1, LAST_CHANNEL]
WPF_R0 = ENC_B_R0 + 1                     # [LAST_CHANNEL, HID]  = proj_w @ w1_vis
BCOMB_R0 = WPF_R0 + LAST_CHANNEL          # [1, HID]             = proj_b@w1_vis + b1
TIME_R0 = BCOMB_R0 + 1                    # [LEN_EPISODE+1, HID] = time_tab @ w1_vis
DIE_R0 = TIME_R0 + (LEN_EPISODE + 1)      # [NUM_DIE, HID]       = die_tab @ w1_die
BLK_R0 = DIE_R0 + NUM_DIE                 # [NUM_DIE, HID]       = w1_blk
W2_R0 = BLK_R0 + NUM_DIE                  # [1, HID]             (w2 transposed)
B2_R0 = W2_R0 + 1                         # [1, 1]
SLAB_ROWS = ((B2_R0 + 1 + 7) // 8) * 8    # 88 rows -> ~44 KB f32

_DEFAULT = jax.lax.Precision.DEFAULT      # single bf16 MXU pass, intentionally


# ------------------------------- kernel ----------------------------------
def critic_kernel(step_ref, layer_ref, nblk_ref, pooled_ref, w_ref, out_ref):
    # ---- shared encoder (substitute): Linear + ReLU on pre-pooled features ----
    enc_w = w_ref[ENC_W_R0:ENC_W_R0 + C_STACK, 0:LAST_CHANNEL]      # [C_STACK, 64]
    enc_b = w_ref[ENC_B_R0:ENC_B_R0 + 1, 0:LAST_CHANNEL]            # [1, 64]
    enc = jnp.dot(pooled_ref[...], enc_w,
                  preferred_element_type=jnp.float32, precision=_DEFAULT) + enc_b
    enc = jnp.maximum(enc, 0.0)                                      # [B, 64]

    # ---- fusion layer 1 with visual projector folded in (single MXU dot) ----
    w_pf = w_ref[WPF_R0:WPF_R0 + LAST_CHANNEL, 0:HID]                # [64, HID]
    b_comb = w_ref[BCOMB_R0:BCOMB_R0 + 1, 0:HID]                     # [1, HID]
    h_lin = jnp.dot(enc, w_pf,
                    preferred_element_type=jnp.float32, precision=_DEFAULT) + b_comb

    # ---- per-step contributions: in-kernel embedding gathers (pre-folded) ----
    blk0 = w_ref[BLK_R0:BLK_R0 + 1, 0:HID]                           # [1, HID]
    blk1 = w_ref[BLK_R0 + 1:BLK_R0 + 2, 0:HID]                       # [1, HID]
    rows = []
    for b in range(B):                                               # B=2, unrolled
        t = w_ref[pl.ds(TIME_R0 + step_ref[b], 1), 0:HID]            # time_emb @ w1_vis
        d = w_ref[pl.ds(DIE_R0 + layer_ref[b], 1), 0:HID]            # die_emb  @ w1_die
        blk = nblk_ref[b, 0] * blk0 + nblk_ref[b, 1] * blk1          # nblk @ w1_blk (VPU MAC)
        rows.append(t + d + blk)
    per_step = jnp.concatenate(rows, axis=0)                         # [B, HID]

    h = jnp.maximum(h_lin + per_step, 0.0)                           # [B, HID]

    # ---- fusion MLP layer 2 (N=1): VPU multiply + lane reduction ----
    w2_row = w_ref[W2_R0:W2_R0 + 1, 0:HID]                           # [1, HID]
    b2 = w_ref[B2_R0:B2_R0 + 1, 0:1]                                 # [1, 1]
    out_ref[...] = jnp.sum(h * w2_row, axis=-1, keepdims=True) + b2  # [B, 1]


# ------------------------------- wrapper ----------------------------------
_VMEM = pl.BlockSpec(memory_space=pltpu.MemorySpace.VMEM)
_SMEM = pl.BlockSpec(memory_space=pltpu.MemorySpace.SMEM)


@jax.jit
def critic_forward(w_slab, obs):
    # Spatial mean pooling fused into the wrapper (no stacked_mask HBM round trip).
    def pool(x):
        return jnp.mean(x.astype(jnp.float32), axis=(-2, -1))

    pooled = jnp.concatenate(
        [pool(obs["canvas"]),                              # [B, NUM_DIE]
         pool(obs["wiremask"])[:, None],
         pool(obs["position_mask"])[:, None],
         pool(obs["wiremask_next"])[:, None],
         pool(obs["position_mask_next"])[:, None],
         pool(obs["alignment_mask"])[:, None]], axis=-1)   # [B, C_STACK]

    step = obs["step"].astype(jnp.int32)                             # [B]
    layer_idx = obs["layer_idx"].astype(jnp.int32)                   # [B]
    nblk = obs["num_blk_without_placing_order"].astype(jnp.float32)  # [B, NUM_DIE]

    out = pl.pallas_call(
        critic_kernel,
        out_shape=jax.ShapeDtypeStruct((B, 1), jnp.float32),
        in_specs=[_SMEM, _SMEM, _SMEM, _VMEM, _VMEM],
        out_specs=_VMEM,
    )(step, layer_idx, nblk, pooled, w_slab)
    return out[:, 0]                                                 # squeeze(-1) -> [B]


# ------------------------ offline parameter packing ------------------------
def pack_params(params):
    """Pack weights (with the projector fold applied) into one [SLAB_ROWS,128] f32 slab."""
    hi = jax.lax.Precision.HIGHEST  # offline, cost-free; keeps the fold accurate
    slab = jnp.zeros((SLAB_ROWS, 128), jnp.float32)

    slab = slab.at[ENC_W_R0:ENC_W_R0 + C_STACK, :LAST_CHANNEL].set(params["enc_w"])
    slab = slab.at[ENC_B_R0, :LAST_CHANNEL].set(params["enc_b"][0])

    w_pf = jnp.dot(params["proj_w"], params["w1_vis"], precision=hi)         # [64, HID]
    b_comb = jnp.dot(params["proj_b"], params["w1_vis"], precision=hi)[0] + params["b1"][0]
    slab = slab.at[WPF_R0:WPF_R0 + LAST_CHANNEL, :HID].set(w_pf)
    slab = slab.at[BCOMB_R0, :HID].set(b_comb)

    time_fold = jnp.dot(params["time_tab"], params["w1_vis"], precision=hi)  # [9, HID]
    die_fold = jnp.dot(params["die_tab"], params["w1_die"], precision=hi)    # [2, HID]
    slab = slab.at[TIME_R0:TIME_R0 + LEN_EPISODE + 1, :HID].set(time_fold)
    slab = slab.at[DIE_R0:DIE_R0 + NUM_DIE, :HID].set(die_fold)
    slab = slab.at[BLK_R0:BLK_R0 + NUM_DIE, :HID].set(params["w1_blk"])

    slab = slab.at[W2_R0, :HID].set(params["w2"][:, 0])
    slab = slab.at[B2_R0, 0].set(params["b2"][0, 0])
    return slab


# -------------------------- pure-JAX reference -----------------------------
def critic_reference(params, obs):
    canvas = obs["canvas"].astype(jnp.float32)
    stacked = jnp.concatenate(
        [canvas,
         obs["wiremask"][:, None], obs["position_mask"][:, None],
         obs["wiremask_next"][:, None], obs["position_mask_next"][:, None],
         obs["alignment_mask"][:, None]], axis=1).astype(jnp.float32)
    pooled = stacked.reshape(B, C_STACK, HW).mean(-1)
    enc = jax.nn.relu(pooled @ params["enc_w"] + params["enc_b"])
    global_feat = enc @ params["proj_w"] + params["proj_b"]
    time_feat = params["time_tab"][obs["step"]]
    fusion = global_feat + time_feat
    die_emb = params["die_tab"][obs["layer_idx"]]
    nblk = obs["num_blk_without_placing_order"].astype(jnp.float32)
    feat = jnp.concatenate([fusion, die_emb, nblk], axis=-1)
    w1 = jnp.concatenate([params["w1_vis"], params["w1_die"], params["w1_blk"]],
                         axis=0)
    h = jax.nn.relu(feat @ w1 + params["b1"])
    return (h @ params["w2"] + params["b2"])[:, 0]


# ------------------------------ param init ---------------------------------
def init_params(key):
    ks = jax.random.split(key, 10)
    s = 0.1
    return {
        "enc_w":   s * jax.random.normal(ks[0], (C_STACK, LAST_CHANNEL), jnp.float32),
        "enc_b":   s * jax.random.normal(ks[1], (1, LAST_CHANNEL), jnp.float32),
        "proj_w":  s * jax.random.normal(ks[2], (LAST_CHANNEL, REDUCED_DIM), jnp.float32),
        "proj_b":  s * jax.random.normal(ks[3], (1, REDUCED_DIM), jnp.float32),
        "time_tab": s * jax.random.normal(ks[4], (LEN_EPISODE + 1, REDUCED_DIM), jnp.float32),
        "die_tab":  s * jax.random.normal(ks[5], (NUM_DIE, NUM_DIE), jnp.float32),
        # fusion layer-1 weight split along the concat axis:
        "w1_vis":  s * jax.random.normal(ks[6], (REDUCED_DIM, HID), jnp.float32),
        "w1_die":  s * jax.random.normal(ks[7], (NUM_DIE, HID), jnp.float32),
        "w1_blk":  s * jax.random.normal(ks[8], (NUM_DIE, HID), jnp.float32),
        "b1":      jnp.zeros((1, HID), jnp.float32),
        "w2":      s * jax.random.normal(ks[9], (HID, 1), jnp.float32),
        "b2":      jnp.zeros((1, 1), jnp.float32),
    }


# --------------------------------- main ------------------------------------
if __name__ == "__main__":
    root = jax.random.PRNGKey(0)
    kp, k1, k2, k3, k4, k5, k6, k7 = jax.random.split(root, 8)

    params = init_params(kp)
    w_slab = pack_params(params)              # single packed weight operand

    obs = {
        "canvas":             jax.random.uniform(k1, (B, NUM_DIE, H, W), jnp.float32),
        "wiremask":           jax.random.uniform(k2, (B, H, W), jnp.float32),
        "position_mask":      jax.random.uniform(k3, (B, H, W), jnp.float32),
        "wiremask_next":      jax.random.uniform(k4, (B, H, W), jnp.float32),
        "position_mask_next": jax.random.uniform(k5, (B, H, W), jnp.float32),
        "alignment_mask":     jax.random.uniform(k6, (B, H, W), jnp.float32),
        "step":               jnp.array([3, 5], jnp.int32),
        "layer_idx":          jnp.array([0, 1], jnp.int32),
        "num_blk_without_placing_order":
            jax.random.uniform(k7, (B, NUM_DIE), jnp.float32),
    }

    value = critic_forward(w_slab, obs)
    value = jax.block_until_ready(value)                     # [B]

    ref = critic_reference(params, obs)
    assert value.shape == (B,)
    # Tolerance reflects the (intentional, review-sanctioned) single-pass bf16
    # MXU precision and the offline projector fold (different accumulation
    # order); observed differences are ~1e-4.
    assert jnp.allclose(value, ref, atol=2e-3, rtol=2e-3), (value, ref)

    print("KERNEL_OK")
</pallas_src>

<mosaic_0001>
module attributes {stable_mosaic.version = 11 : i64} {
  func.func @critic_kernel(%arg0: memref<2xi32, #tpu.memory_space<smem>>, %arg1: memref<2xi32, #tpu.memory_space<smem>>, %arg2: memref<2x2xf32, #tpu.memory_space<smem>>, %arg3: memref<2x7xf32, #tpu.memory_space<vmem>>, %arg4: memref<88x128xf32, #tpu.memory_space<vmem>>, %arg5: memref<2x1xf32, #tpu.memory_space<vmem>>) attributes {dimension_semantics = [], scalar_prefetch = 0 : i64, scratch_operands = 0 : i64, tpu.core_type = #tpu.core_type<tc>} {
    %c0 = arith.constant 0 : index
    %c0_0 = arith.constant 0 : index
    %0 = vector.load %arg4[%c0, %c0_0] : memref<88x128xf32, #tpu.memory_space<vmem>>, vector<7x64xf32>
    %c7 = arith.constant 7 : index
    %c0_1 = arith.constant 0 : index
    %1 = vector.load %arg4[%c7, %c0_1] : memref<88x128xf32, #tpu.memory_space<vmem>>, vector<1x64xf32>
    %c0_2 = arith.constant 0 : index
    %c0_3 = arith.constant 0 : index
    %2 = vector.load %arg3[%c0_2, %c0_3] : memref<2x7xf32, #tpu.memory_space<vmem>>, vector<2x7xf32>
    %cst = arith.constant dense<0.000000e+00> : vector<2x64xf32>
    %3 = tpu.matmul %2, %0, %cst {dimension_numbers = #tpu.dot_dimension_numbers<[1], [0], [0], [1], [0, 0, 1, 1], [], []>} : vector<2x7xf32>, vector<7x64xf32>, vector<2x64xf32> -> vector<2x64xf32>
    %4 = vector.broadcast %1 : vector<1x64xf32> to vector<2x64xf32>
    %5 = arith.addf %3, %4 : vector<2x64xf32>
    %cst_4 = arith.constant 0.000000e+00 : f32
    %6 = vector.broadcast %cst_4 : f32 to vector<2x64xf32>
    %7 = arith.maximumf %5, %6 : vector<2x64xf32>
    %c8 = arith.constant 8 : index
    %c0_5 = arith.constant 0 : index
    %8 = vector.load %arg4[%c8, %c0_5] : memref<88x128xf32, #tpu.memory_space<vmem>>, vector<64x18xf32>
    %c72 = arith.constant 72 : index
    %c0_6 = arith.constant 0 : index
    %9 = vector.load %arg4[%c72, %c0_6] : memref<88x128xf32, #tpu.memory_space<vmem>>, vector<1x18xf32>
    %cst_7 = arith.constant dense<0.000000e+00> : vector<2x18xf32>
    %10 = tpu.matmul %7, %8, %cst_7 {dimension_numbers = #tpu.dot_dimension_numbers<[1], [0], [0], [1], [0, 0, 1, 1], [], []>} : vector<2x64xf32>, vector<64x18xf32>, vector<2x18xf32> -> vector<2x18xf32>
    %11 = vector.broadcast %9 : vector<1x18xf32> to vector<2x18xf32>
    %12 = arith.addf %10, %11 : vector<2x18xf32>
    %c84 = arith.constant 84 : index
    %c0_8 = arith.constant 0 : index
    %13 = vector.load %arg4[%c84, %c0_8] : memref<88x128xf32, #tpu.memory_space<vmem>>, vector<1x18xf32>
    %c85 = arith.constant 85 : index
    %c0_9 = arith.constant 0 : index
    %14 = vector.load %arg4[%c85, %c0_9] : memref<88x128xf32, #tpu.memory_space<vmem>>, vector<1x18xf32>
    %c0_10 = arith.constant 0 : index
    %15 = memref.load %arg0[%c0_10] : memref<2xi32, #tpu.memory_space<smem>>
    %c73_i32 = arith.constant 73 : i32
    %16 = arith.addi %c73_i32, %15 : i32
    %17 = arith.index_cast %16 : i32 to index
    %c0_11 = arith.constant 0 : index
    %18 = vector.load %arg4[%17, %c0_11] : memref<88x128xf32, #tpu.memory_space<vmem>>, vector<1x18xf32>
    %c0_12 = arith.constant 0 : index
    %19 = memref.load %arg1[%c0_12] : memref<2xi32, #tpu.memory_space<smem>>
    %c82_i32 = arith.constant 82 : i32
    %20 = arith.addi %c82_i32, %19 : i32
    %21 = arith.index_cast %20 : i32 to index
    %c0_13 = arith.constant 0 : index
    %22 = vector.load %arg4[%21, %c0_13] : memref<88x128xf32, #tpu.memory_space<vmem>>, vector<1x18xf32>
    %c0_14 = arith.constant 0 : index
    %c0_15 = arith.constant 0 : index
    %23 = memref.load %arg2[%c0_14, %c0_15] : memref<2x2xf32, #tpu.memory_space<smem>>
    %24 = vector.broadcast %23 : f32 to vector<1x18xf32>
    %25 = arith.mulf %24, %13 : vector<1x18xf32>
    %c0_16 = arith.constant 0 : index
    %c1 = arith.constant 1 : index
    %26 = memref.load %arg2[%c0_16, %c1] : memref<2x2xf32, #tpu.memory_space<smem>>
    %27 = vector.broadcast %26 : f32 to vector<1x18xf32>
    %28 = arith.mulf %27, %14 : vector<1x18xf32>
    %29 = arith.addf %25, %28 : vector<1x18xf32>
    %30 = arith.addf %18, %22 : vector<1x18xf32>
    %31 = arith.addf %30, %29 : vector<1x18xf32>
    %c1_17 = arith.constant 1 : index
    %32 = memref.load %arg0[%c1_17] : memref<2xi32, #tpu.memory_space<smem>>
    %c73_i32_18 = arith.constant 73 : i32
    %33 = arith.addi %c73_i32_18, %32 : i32
    %34 = arith.index_cast %33 : i32 to index
    %c0_19 = arith.constant 0 : index
    %35 = vector.load %arg4[%34, %c0_19] : memref<88x128xf32, #tpu.memory_space<vmem>>, vector<1x18xf32>
    %c1_20 = arith.constant 1 : index
    %36 = memref.load %arg1[%c1_20] : memref<2xi32, #tpu.memory_space<smem>>
    %c82_i32_21 = arith.constant 82 : i32
    %37 = arith.addi %c82_i32_21, %36 : i32
    %38 = arith.index_cast %37 : i32 to index
    %c0_22 = arith.constant 0 : index
    %39 = vector.load %arg4[%38, %c0_22] : memref<88x128xf32, #tpu.memory_space<vmem>>, vector<1x18xf32>
    %c1_23 = arith.constant 1 : index
    %c0_24 = arith.constant 0 : index
    %40 = memref.load %arg2[%c1_23, %c0_24] : memref<2x2xf32, #tpu.memory_space<smem>>
    %41 = vector.broadcast %40 : f32 to vector<1x18xf32>
    %42 = arith.mulf %41, %13 : vector<1x18xf32>
    %c1_25 = arith.constant 1 : index
    %c1_26 = arith.constant 1 : index
    %43 = memref.load %arg2[%c1_25, %c1_26] : memref<2x2xf32, #tpu.memory_space<smem>>
    %44 = vector.broadcast %43 : f32 to vector<1x18xf32>
    %45 = arith.mulf %44, %14 : vector<1x18xf32>
    %46 = arith.addf %42, %45 : vector<1x18xf32>
    %47 = arith.addf %35, %39 : vector<1x18xf32>
    %48 = arith.addf %47, %46 : vector<1x18xf32>
    %49 = tpu.concatenate %31, %48 in 0 : vector<1x18xf32>, vector<1x18xf32> -> vector<2x18xf32>
    %50 = arith.addf %12, %49 : vector<2x18xf32>
    %cst_27 = arith.constant 0.000000e+00 : f32
    %51 = vector.broadcast %cst_27 : f32 to vector<2x18xf32>
    %52 = arith.maximumf %50, %51 : vector<2x18xf32>
    %c86 = arith.constant 86 : index
    %c0_28 = arith.constant 0 : index
    %53 = vector.load %arg4[%c86, %c0_28] : memref<88x128xf32, #tpu.memory_space<vmem>>, vector<1x18xf32>
    %c87 = arith.constant 87 : index
    %c0_29 = arith.constant 0 : index
    %54 = vector.load %arg4[%c87, %c0_29] : memref<88x128xf32, #tpu.memory_space<vmem>>, vector<1x1xf32>
    %55 = vector.broadcast %53 : vector<1x18xf32> to vector<2x18xf32>
    %56 = arith.mulf %52, %55 : vector<2x18xf32>
    %cst_30 = arith.constant dense<0.000000e+00> : vector<2xf32>
    %57 = vector.multi_reduction <add>, %56, %cst_30 [1] : vector<2x18xf32> to vector<2xf32>
    %58 = vector.shape_cast %57 : vector<2xf32> to vector<2x1xf32>
    %59 = vector.broadcast %54 : vector<1x1xf32> to vector<2x1xf32>
    %60 = arith.addf %58, %59 : vector<2x1xf32>
    %c0_31 = arith.constant 0 : index
    %c0_32 = arith.constant 0 : index
    %61 = vector.load %arg5[%c0_31, %c0_32] : memref<2x1xf32, #tpu.memory_space<vmem>>, vector<2x1xf32>
    tpu.vector_store %arg5[%c0_31, %c0_32], %60 {strides = array<i32>} : memref<2x1xf32, #tpu.memory_space<vmem>>, vector<2x1xf32>,
    return
  }
}

</mosaic_0001>

<llo_original>
// kernel: critic_forward.1
$region0: #{critic_forward.1}
  #allocation0 [shape = 'u32[]', space=smem, size = 0x4, offset = 0x4, fixed_abs, tag = 'smem constant byte address 0x4 - core index']
  #allocation1 [shape = 'u32[144,128]{1,0:T(1,128)}', space=vmem, size = 0x12000, scoped, tag = 'internal scratch']
  %s0 = inlined_call_operand.vmem [shape: s32[2], index: 0, kind: input, shape index: {}]
  %s1 = inlined_call_operand.vmem [shape: s32[2], index: 1, kind: input, shape index: {}]
  %s2 = inlined_call_operand.vmem [shape: f32[2,2], index: 2, kind: input, shape index: {}]
  %s3 = inlined_call_operand.vmem [shape: f32[2,7], index: 3, kind: input, shape index: {}]
  %s4 = inlined_call_operand.vmem [shape: f32[88,128], index: 4, kind: input, shape index: {}]
  %s5 = inlined_call_operand.vmem [shape: f32[2,1], index: 5, kind: output, shape index: {}]
  %s6 = sld [smem:[#allocation0]]
  $region42: #{critic_forward.1} parent=0
    _
  %s8 = ssub.s32 1, %s6
  %s9 = scalar_select 0, %s8, %s6
  $region1: #{critic_forward.1} parent=0
    #allocation2 [shape = 'u8[512]{0}', space=smem, size = 0x200, scoped, tag = 'input window, operand 0, single buffered']
    #allocation3 [shape = 's32[1]{0}', space=sflag, size = 0x4, scoped, tag = 'scoped memory for critic_forward.1']
    #allocation4 [shape = 'u8[512]{0}', space=smem, size = 0x200, scoped, tag = 'input window, operand 1, single buffered']
    #allocation5 [shape = 's32[1]{0}', space=sflag, size = 0x4, scoped, tag = 'scoped memory for critic_forward.1']
    #allocation6 [shape = 'u8[1024]{0}', space=smem, size = 0x400, scoped, tag = 'input window, operand 2, single buffered']
    %10 = vsyncpa [#allocation3], 0
    %11 = vsyncpa [#allocation5], 0
    // Predicated region
    $region2: #{critic_forward.1} parent=1 // pred_check
      _
    $region3: #{critic_forward.1} parent=1 // pred_check_branch
      %13 = sbr.rel (0) target = $region5
    $region4: #{critic_forward.1} parent=1 // pred_region
      %s15 = ssub.s32 16, 16
      %16 = vsyncadd [#allocation3], %s15
      %s18 = sshll.u32 %s0, 4
      %s19 = int_to_ptr.vmem [resolvable:$true] %s18
      %21 = dma.vmem_to_smem %s19, 16, [#allocation2], [#allocation3]
    $region5: #{critic_forward.1} parent=1 // pred_fallthru
      _
    // Predicated region
    $region6: #{critic_forward.1} parent=1 // pred_check
      _
    $region7: #{critic_forward.1} parent=1 // pred_check_branch
      %23 = sbr.rel (0) target = $region9
    $region8: #{critic_forward.1} parent=1 // pred_region
      %s25 = ssub.s32 16, 16
      %26 = vsyncadd [#allocation5], %s25
      %s28 = sshll.u32 %s1, 4
      %s29 = int_to_ptr.vmem [resolvable:$true] %s28
      %31 = dma.vmem_to_smem %s29, 16, [#allocation4], [#allocation5]
    $region9: #{critic_forward.1} parent=1 // pred_fallthru
      _
    // Predicated region
    $region10: #{critic_forward.1} parent=1 // pred_check
      _
    $region11: #{critic_forward.1} parent=1 // pred_check_branch
      %33 = sbr.rel (0) target = $region13
    $region12: #{critic_forward.1} parent=1 // pred_region
      %s35 = ssub.s32 32, 32
      %36 = vsyncadd [#allocation5], %s35
      %s38 = sshll.u32 %s2, 4
      %s39 = int_to_ptr.vmem [resolvable:$true] %s38
      %41 = dma.vmem_to_smem %s39, 32, [#allocation6], [#allocation5]
    $region13: #{critic_forward.1} parent=1 // pred_fallthru
      _
    // Predicated region
    $region14: #{critic_forward.1} parent=1 // pred_check
      _
    $region15: #{critic_forward.1} parent=1 // pred_check_branch
      %43 = sbr.rel (0) target = $region17
    $region16: #{critic_forward.1} parent=1 // pred_region
      _
    $region17: #{critic_forward.1} parent=1 // pred_fallthru
      _
    // Predicated region
    $region18: #{critic_forward.1} parent=1 // pred_check
      _
    $region19: #{critic_forward.1} parent=1 // pred_check_branch
      %45 = sbr.rel (0) target = $region21
    $region20: #{critic_forward.1} parent=1 // pred_region
      _
    $region21: #{critic_forward.1} parent=1 // pred_fallthru
      _
    // Predicated region
    $region22: #{critic_forward.1} parent=1 // pred_check
      _
    $region23: #{critic_forward.1} parent=1 // pred_check_branch
      %47 = sbr.rel (0) target = $region25
    $region24: #{critic_forward.1} parent=1 // pred_region
      %48 = dma.done [#allocation3], 16
    $region25: #{critic_forward.1} parent=1 // pred_fallthru
      _
    // Predicated region
    $region26: #{critic_forward.1} parent=1 // pred_check
      _
    $region27: #{critic_forward.1} parent=1 // pred_check_branch
      %50 = sbr.rel (0) target = $region29
    $region28: #{critic_forward.1} parent=1 // pred_region
      %51 = dma.done [#allocation5], 16
    $region29: #{critic_forward.1} parent=1 // pred_fallthru
      _
    // Predicated region
    $region30: #{critic_forward.1} parent=1 // pred_check
      _
    $region31: #{critic_forward.1} parent=1 // pred_check_branch
      %53 = sbr.rel (0) target = $region33
    $region32: #{critic_forward.1} parent=1 // pred_region
      %54 = dma.done [#allocation5], 32
    $region33: #{critic_forward.1} parent=1 // pred_fallthru
      _
    %55 = sfence
    %v56 = vld [vmem:[%s4] sm:$0x7f]
    %v57 = vld [vmem:[%s4 + $0x7] sm:$0x1]
    %v58 = vld [vmem:[%s3] sm:$0x3]
    %v59 = vlaneseq
    %v60 = vshrl.u32 %v59, 7
    %v61 = vsub.s32 0, %v60
    %v62 = vrot.slane %v57, %v61
    %vm63 = vcmask 56320
    %v65 = vsel %vm63, %v58, 0
    %vm67 = vcmask 1046528
    %v69 = vsel %vm67, %v56, 0
    %71 = vmatprep.subr.mxu0 0.0
    %72 = vmatpush1.msra.mxu0 %v69
    %73 = vmatprep.subr.mxu0 0.0
    %74 = vmatpush1.msra.mxu0 0.0
    %75 = vmatprep.subr.mxu0 0.0
    %76 = vmatpush1.msra.mxu0 0.0
    %77 = vmatprep.subr.mxu0 0.0
    %78 = vmatpush1.msra.mxu0 0.0
    %79 = vmatprep.subr.mxu0 0.0
    %80 = vmatpush1.msra.mxu0 0.0
    %81 = vmatprep.subr.mxu0 0.0
    %82 = vmatpush1.msra.mxu0 0.0
    %83 = vmatprep.subr.mxu0 0.0
    %84 = vmatpush1.msra.mxu0 0.0
    %85 = vmatprep.subr.mxu0 0.0
    %86 = vmatpush1.msra.mxu0 0.0
    %87 = vmatprep.subr.mxu0 0.0
    %88 = vmatpush1.msra.mxu0 0.0
    %89 = vmatprep.subr.mxu0 0.0
    %90 = vmatpush1.msra.mxu0 0.0
    %91 = vmatprep.subr.mxu0 0.0
    %92 = vmatpush1.msra.mxu0 0.0
    %93 = vmatprep.subr.mxu0 0.0
    %94 = vmatpush1.msra.mxu0 0.0
    %95 = vmatprep.subr.mxu0 0.0
    %96 = vmatpush1.msra.mxu0 0.0
    %97 = vmatprep.subr.mxu0 0.0
    %98 = vmatpush1.msra.mxu0 0.0
    %99 = vmatprep.subr.mxu0 0.0
    %100 = vmatpush1.msra.mxu0 0.0
    %101 = vmatprep.subr.mxu0 0.0
    %102 = vmatpush1.msra.mxu0 0.0
    %103 = vmatprep.subr.mxu0 0.0
    %104 = vmatpush1.msra.mxu0 0.0
    %105 = vmatprep.subr.mxu0 0.0
    %106 = vmatpush1.msra.mxu0 0.0
    %107 = vmatprep.subr.mxu0 0.0
    %108 = vmatpush1.msra.mxu0 0.0
    %109 = vmatprep.subr.mxu0 0.0
    %110 = vmatpush1.msra.mxu0 0.0
    %111 = vmatprep.subr.mxu0 0.0
    %112 = vmatpush1.msra.mxu0 0.0
    %113 = vmatprep.subr.mxu0 0.0
    %114 = vmatpush1.msra.mxu0 0.0
    %115 = vmatprep.subr.mxu0 0.0
    %116 = vmatpush1.msra.mxu0 0.0
    %117 = vmatprep.subr.mxu0 0.0
    %118 = vmatpush1.msra.mxu0 0.0
    %119 = vmatprep.subr.mxu0 0.0
    %120 = vmatpush1.msra.mxu0 0.0
    %121 = vmatprep.subr.mxu0 0.0
    %122 = vmatpush1.msra.mxu0 0.0
    %123 = vmatprep.subr.mxu0 0.0
    %124 = vmatpush1.msra.mxu0 0.0
    %125 = vmatprep.subr.mxu0 0.0
    %126 = vmatpush1.msra.mxu0 0.0
    %127 = vmatprep.subr.mxu0 0.0
    %128 = vmatpush1.msra.mxu0 0.0
    %129 = vmatprep.subr.mxu0 0.0
    %130 = vmatpush1.msra.mxu0 0.0
    %131 = vmatprep.subr.mxu0 0.0
    %132 = vmatpush1.msra.mxu0 0.0
    %133 = vmatprep.subr.mxu0 0.0
    %134 = vmatpush1.msra.mxu0 0.0
    %135 = vmatprep.mubr.f32.mxu0 0.0
    %136 = vmatmul.mubr.f32.gmra.mrb[0].mxu0 %v65
    %v137 = vpop.f32.mrb[0].mxu0
    %v138 = vadd.f32 %v62, %v137
    %v139 = vpop.f32.mrb[0].mxu0
    %140 = vdwg.mxu0
    %v141 = vmax.f32 %v138, 0.0
    %v142 = vld [vmem:[%s4 + $0x8] sm:$0xff]
    %v143 = vld [vmem:[%s4 + $0x10] sm:$0xff]
    %v144 = vld [vmem:[%s4 + $0x18] sm:$0xff]
    %v145 = vld [vmem:[%s4 + $0x20] sm:$0xff]
    %v146 = vld [vmem:[%s4 + $0x28] sm:$0xff]
    %v147 = vld [vmem:[%s4 + $0x30] sm:$0xff]
    %v148 = vld [vmem:[%s4 + $0x38] sm:$0xff]
    %v149 = vld [vmem:[%s4 + $0x40] sm:$0xff]
    %v150 = vld [vmem:[%s4 + $0x48] sm:$0x1]
    %v151 = vlaneseq
    %v152 = vshrl.u32 %v151, 7
    %v153 = vsub.s32 0, %v152
    %v154 = vrot.slane %v150, %v153
    %vm155 = vcmask 523264
    %v157 = vsel %vm155, %v141, 0
    %159 = vmatprep.subr.mxu0 0.0
    %160 = vmatpush1.msra.mxu0 %v142
    %161 = vmatprep.subr.mxu0 0.0
    %162 = vmatpush1.msra.mxu0 %v143
    %163 = vmatprep.subr.mxu0 0.0
    %164 = vmatpush1.msra.mxu0 %v144
    %165 = vmatprep.subr.mxu0 0.0
    %166 = vmatpush1.msra.mxu0 %v145
    %167 = vmatprep.subr.mxu0 0.0
    %168 = vmatpush1.msra.mxu0 %v146
    %169 = vmatprep.subr.mxu0 0.0
    %170 = vmatpush1.msra.mxu0 %v147
    %171 = vmatprep.subr.mxu0 0.0
    %172 = vmatpush1.msra.mxu0 %v148
    %173 = vmatprep.subr.mxu0 0.0
    %174 = vmatpush1.msra.mxu0 %v149
    %175 = vmatprep.subr.mxu0 0.0
    %176 = vmatpush1.msra.mxu0 0.0
    %177 = vmatprep.subr.mxu0 0.0
    %178 = vmatpush1.msra.mxu0 0.0
    %179 = vmatprep.subr.mxu0 0.0
    %180 = vmatpush1.msra.mxu0 0.0
    %181 = vmatprep.subr.mxu0 0.0
    %182 = vmatpush1.msra.mxu0 0.0
    %183 = vmatprep.subr.mxu0 0.0
    %184 = vmatpush1.msra.mxu0 0.0
    %185 = vmatprep.subr.mxu0 0.0
    %186 = vmatpush1.msra.mxu0 0.0
    %187 = vmatprep.subr.mxu0 0.0
    %188 = vmatpush1.msra.mxu0 0.0
    %189 = vmatprep.subr.mxu0 0.0
    %190 = vmatpush1.msra.mxu0 0.0
    %191 = vmatprep.subr.mxu0 0.0
    %192 = vmatpush1.msra.mxu0 0.0
    %193 = vmatprep.subr.mxu0 0.0
    %194 = vmatpush1.msra.mxu0 0.0
    %195 = vmatprep.subr.mxu0 0.0
    %196 = vmatpush1.msra.mxu0 0.0
    %197 = vmatprep.subr.mxu0 0.0
    %198 = vmatpush1.msra.mxu0 0.0
    %199 = vmatprep.subr.mxu0 0.0
    %200 = vmatpush1.msra.mxu0 0.0
    %201 = vmatprep.subr.mxu0 0.0
    %202 = vmatpush1.msra.mxu0 0.0
    %203 = vmatprep.subr.mxu0 0.0
    %204 = vmatpush1.msra.mxu0 0.0
    %205 = vmatprep.subr.mxu0 0.0
    %206 = vmatpush1.msra.mxu0 0.0
    %207 = vmatprep.subr.mxu0 0.0
    %208 = vmatpush1.msra.mxu0 0.0
    %209 = vmatprep.subr.mxu0 0.0
    %210 = vmatpush1.msra.mxu0 0.0
    %211 = vmatprep.subr.mxu0 0.0
    %212 = vmatpush1.msra.mxu0 0.0
    %213 = vmatprep.subr.mxu0 0.0
    %214 = vmatpush1.msra.mxu0 0.0
    %215 = vmatprep.subr.mxu0 0.0
    %216 = vmatpush1.msra.mxu0 0.0
    %217 = vmatprep.subr.mxu0 0.0
    %218 = vmatpush1.msra.mxu0 0.0
    %219 = vmatprep.subr.mxu0 0.0
    %220 = vmatpush1.msra.mxu0 0.0
    %221 = vmatprep.subr.mxu0 0.0
    %222 = vmatpush1.msra.mxu0 0.0
    %223 = vmatprep.mubr.f32.mxu0 0.0
    %224 = vmatmul.mubr.f32.gmra.mrb[0].mxu0 %v157
    %v225 = vpop.f32.mrb[0].mxu0
    %v226 = vadd.f32 %v154, %v225
    %v227 = vpop.f32.mrb[0].mxu0
    %228 = vdwg.mxu0
    %v229 = vld [vmem:[%s4 + $0x54] sm:$0x1]
    %v230 = vld [vmem:[%s4 + $0x55] sm:$0x1]
    %s231 = sld [smem:[#allocation2]]
    %s232 = sadd.s32 %s231, 73
    %s233 = scalar_lea.vmem %s4, %s232
    %v234 = vld [vmem:[%s233] sm:$0x1]
    %s235 = sld [smem:[#allocation4]]
    %s236 = sadd.s32 %s235, 82
    %s237 = scalar_lea.vmem %s4, %s236
    %v238 = vld [vmem:[%s237] sm:$0x1]
    %s239 = sld [smem:[#allocation6]]
    %v240 = vstv %s239
    %v241 = vmul.f32 %v240, %v229
    %s242 = sld [smem:[#allocation6 + $0x1]]
    %v243 = vstv %s242
    %v244 = vmul.f32 %v243, %v230
    %v245 = vadd.f32 %v241, %v244
    %v246 = vadd.f32 %v234, %v238
    %v247 = vadd.f32 %v246, %v245
    %s248 = sld [smem:[#allocation2 + $0x1]]
    %s249 = sadd.s32 %s248, 73
    %s250 = scalar_lea.vmem %s4, %s249
    %v251 = vld [vmem:[%s250] sm:$0x1]
    %s252 = sld [smem:[#allocation4 + $0x1]]
    %s253 = sadd.s32 %s252, 82
    %s254 = scalar_lea.vmem %s4, %s253
    %v255 = vld [vmem:[%s254] sm:$0x1]
    %s256 = sld [smem:[#allocation6 + $0x80]]
    %v257 = vstv %s256
    %v258 = vmul.f32 %v257, %v229
    %s259 = sld [smem:[#allocation6 + $0x81]]
    %v260 = vstv %s259
    %v261 = vmul.f32 %v260, %v230
    %v262 = vadd.f32 %v258, %v261
    %v263 = vadd.f32 %v251, %v255
    %v264 = vadd.f32 %v263, %v262
    %v266 = vrot.slane %v264, 7
    %vm268 = vcmask 1040384
    %v269 = vsel %vm268, %v247, %v266
    %v270 = vadd.f32 %v226, %v269
    %v271 = vmax.f32 %v270, 0.0
    %v272 = vld [vmem:[%s4 + $0x56] sm:$0x1]
    %v273 = vld [vmem:[%s4 + $0x57] sm:$0x1]
    %v274 = vlaneseq
    %v275 = vshrl.u32 %v274, 7
    %v276 = vsub.s32 0, %v275
    %v277 = vrot.slane %v272, %v276
    %v278 = vmul.f32 %v271, %v277
    %vm279 = vcmask 140288
    %v280 = vsel %vm279, %v278, 0.0
    %281 = vadd.xlane.f32.xlu0 %v280
    %v282 = vpop.xlane.xlu0 %281
    %v283 = vlaneseq
    %v284 = vshrl.u32 %v283, 7
    %v285 = vsub.s32 0, %v284
    %v286 = vrot.slane %v273, %v285
    %v287 = vadd.f32 %v282, %v286
    %vm288 = vcmask 1024
    %289 = vst.msk [vmem:[%s5] sm:$0x3] %vm288, %v287
    // Predicated region
    $region34: #{critic_forward.1} parent=1 // pred_check
      _
    $region35: #{critic_forward.1} parent=1 // pred_check_branch
      %291 = sbr.rel (0) target = $region37
    $region36: #{critic_forward.1} parent=1 // pred_region
      _
    $region37: #{critic_forward.1} parent=1 // pred_fallthru
      _
    // Predicated region
    $region38: #{critic_forward.1} parent=1 // pred_check
      _
    $region39: #{critic_forward.1} parent=1 // pred_check_branch
      %293 = sbr.rel (0) target = $region41
    $region40: #{critic_forward.1} parent=1 // pred_region
      _
    $region41: #{critic_forward.1} parent=1 // pred_fallthru
      _
    %294 = vsyncpa [#allocation3], 1
    %295 = vsyncpa [#allocation5], 1

</llo_original>
